<compile_context>
chip_gen: v5e
topology: v5e:2x2
jax: 0.10.0
libtpu: 0.0.40
codegen_flags: <defaults>
</compile_context>

<pallas_src>
import math

import numpy as np
import jax
import jax.numpy as jnp
from jax.experimental import pallas as pl
from jax.experimental.pallas import tpu as pltpu

# ---- model dims (small, consistent with the module) ----
B = 2            # batch
S = 8            # seq_len == config.max_seq_len
H = 32           # hidden_size
NH = 4           # num_attention_heads
HD = H // NH     # attention_head_size
BS = B * S       # 16 flattened (batch, seq) rows
R = NH * BS      # 64 head-stacked rows: chunk h = all 16 rows, head h

_NEG = -1e30     # additive mask for invalid score entries (exp underflows to 0)


def _build_constants():
    """Compile-time constants (numpy): head-placement mask and batch-block mask."""
    rows = np.arange(R)
    head_of_row = rows // BS                      # head owning each stacked row
    lane_head = np.arange(H) // HD                # head owning each hidden lane
    # (64, 32): chunk h keeps only lanes [h*HD, (h+1)*HD)
    head_place = (head_of_row[:, None] == lane_head[None, :]).astype(np.float32)
    # (64, 16): row (h, b, s) may only attend to key columns of the same batch b
    row_batch = (rows % BS) // S
    col_batch = np.arange(BS) // S
    block_mask = np.where(row_batch[:, None] == col_batch[None, :],
                          0.0, _NEG).astype(np.float32)
    return head_place, block_mask


def _self_attention_kernel(x_ref, w_qkv_ref, b_qkv_ref, place_ref, bmask_ref, o_ref):
    """Single invocation handles the whole (B, S, H) problem (a few KiB in VMEM).

    x_ref     : (BS, H)   hidden states, flattened over batch
    w_qkv_ref : (H, 3H)   [W_q^T | W_k^T | W_v^T] (nn.Linear weights, transposed)
    b_qkv_ref : (1, 3H)   [b_q | b_k | b_v]
    place_ref : (R, H)    0/1 head-placement mask (constant)
    bmask_ref : (R, BS)   0 / -1e30 batch-block additive mask (constant)
    o_ref     : (BS, H)   context layer output
    """
    x = x_ref[...]                                                   # (16, 32)

    # 1) fused Q/K/V projection: one MXU matmul + one bias add.
    qkv = jnp.dot(x, w_qkv_ref[...],
                  preferred_element_type=jnp.float32) + b_qkv_ref[...]   # (16, 96)
    q = qkv[:, 0:H]                                                  # (16, 32)
    k = qkv[:, H:2 * H]                                              # (16, 32)
    v = qkv[:, 2 * H:3 * H]                                          # (16, 32)

    # 2) head-stacked queries: chunk h (16 rows) = q with only head-h lanes kept.
    place = place_ref[...]                                           # (64, 32)
    q_stack = jnp.concatenate([q] * NH, axis=0) * place              # (64, 32)

    # 3) all (head, batch) scores with ONE matmul: contracting over the hidden
    #    lanes picks out head h's q . head h's k for row chunk h (other lanes
    #    of q_stack are exactly zero).  Cross-batch columns get -1e30.
    scores = jax.lax.dot_general(q_stack, k, (((1,), (1,)), ((), ())),
                                 preferred_element_type=jnp.float32)     # (64, 16)
    scores = scores * (1.0 / math.sqrt(HD)) + bmask_ref[...]

    # 4) numerically-stable softmax, one batched chain for all heads/batches.
    #    (exact divide: the approximate reciprocal was not accurate enough)
    m = jnp.max(scores, axis=-1, keepdims=True)
    e = jnp.exp(scores - m)                                          # masked cols -> 0.0
    denom = jnp.sum(e, axis=-1, keepdims=True)
    probs = e * (1.0 / denom)                                        # (64, 16)

    # 5) all-head context with ONE matmul; head-place each chunk, then sum the
    #    NH chunks (disjoint lane supports -> the sum is a pure merge).
    ctx = jnp.dot(probs, v, preferred_element_type=jnp.float32) * place   # (64, 32)
    out = ctx[0:BS]
    for h in range(1, NH):
        out = out + ctx[h * BS:(h + 1) * BS]                         # (16, 32)
    o_ref[...] = out.astype(o_ref.dtype)                             # single store


def prepare_params(wq_t, bq, wk_t, bk, wv_t, bv):
    """One-time parameter fusion (kept OUT of the per-call forward path)."""
    w_qkv = jnp.concatenate([wq_t, wk_t, wv_t], axis=1)              # (H, 3H)
    b_qkv = jnp.concatenate([bq, bk, bv], axis=0).reshape(1, 3 * H)  # (1, 3H)
    head_place, block_mask = _build_constants()
    return w_qkv, b_qkv, jnp.asarray(head_place), jnp.asarray(block_mask)


@jax.jit
def self_attention(x, w_qkv, b_qkv, head_place, block_mask):
    """x: (B, S, H) float32 -> context layer (B, S, H).

    The torch module always feeds an all-zero additive attention mask, so it is
    a numerical no-op and is not shipped to the kernel.
    TODO(synk): non-zero attention masks and attention dropout (p > 0, training
    mode) are not implemented; add them to `scores` / `probs` if ever needed.
    (The torch module returns a 1-tuple; here the context tensor is returned.)
    """
    x2d = x.reshape(BS, H)
    out2d = pl.pallas_call(
        _self_attention_kernel,
        out_shape=jax.ShapeDtypeStruct((BS, H), x.dtype),
        grid_spec=pltpu.PrefetchScalarGridSpec(
            num_scalar_prefetch=0,
            grid=(1,),                                   # one step: no pipeline overhead
            in_specs=[
                pl.BlockSpec((BS, H), lambda i: (0, 0)),         # x (flattened)
                pl.BlockSpec((H, 3 * H), lambda i: (0, 0)),      # fused W^T
                pl.BlockSpec((1, 3 * H), lambda i: (0, 0)),      # fused bias
                pl.BlockSpec((R, H), lambda i: (0, 0)),          # head-placement mask
                pl.BlockSpec((R, BS), lambda i: (0, 0)),         # batch-block mask
            ],
            out_specs=pl.BlockSpec((BS, H), lambda i: (0, 0)),
        ),
        compiler_params=pltpu.CompilerParams(
            dimension_semantics=("arbitrary",)),
    )(x2d, w_qkv, b_qkv, head_place, block_mask)
    return out2d.reshape(B, S, H)


def _reference(x, mask, wq_t, bq, wk_t, bk, wv_t, bv):
    """Plain-JAX reference matching BertSelfAttention.forward."""
    q = x @ wq_t + bq
    k = x @ wk_t + bk
    v = x @ wv_t + bv

    def split_heads(t):  # (B,S,H) -> (B,NH,S,HD)
        return t.reshape(B, S, NH, HD).transpose(0, 2, 1, 3)

    qh, kh, vh = split_heads(q), split_heads(k), split_heads(v)
    scores = jnp.einsum('bhqd,bhkd->bhqk', qh, kh) / math.sqrt(HD)
    scores = scores + mask  # (B,1,1,S) broadcast (zeros)
    probs = jax.nn.softmax(scores, axis=-1)
    ctx = jnp.einsum('bhqk,bhkd->bhqd', probs, vh)
    return ctx.transpose(0, 2, 1, 3).reshape(B, S, H)


if __name__ == "__main__":
    key = jax.random.PRNGKey(0)
    kx, kq, kbq, kk, kbk, kv, kbv = jax.random.split(key, 7)

    # Deterministic synthetic parameters (nn.Linear(hidden, hidden) shapes).
    x = jax.random.normal(kx, (B, S, H), dtype=jnp.float32)
    bound = 1.0 / math.sqrt(H)
    wq_t = jax.random.uniform(kq, (H, H), jnp.float32, -bound, bound)   # W_q^T
    bq = jax.random.uniform(kbq, (H,), jnp.float32, -bound, bound)
    wk_t = jax.random.uniform(kk, (H, H), jnp.float32, -bound, bound)   # W_k^T
    bk = jax.random.uniform(kbk, (H,), jnp.float32, -bound, bound)
    wv_t = jax.random.uniform(kv, (H, H), jnp.float32, -bound, bound)   # W_v^T
    bv = jax.random.uniform(kbv, (H,), jnp.float32, -bound, bound)

    # The module builds a zero additive mask of shape (B, 1, 1, max_seq_len).
    mask = jnp.zeros((B, 1, 1, S), dtype=jnp.float32)

    params = prepare_params(wq_t, bq, wk_t, bk, wv_t, bv)   # one-time fusion
    out = self_attention(x, *params)
    out = jax.block_until_ready(out)

    ref = _reference(x, mask, wq_t, bq, wk_t, bk, wv_t, bv)
    assert out.shape == (B, S, H)
    # Tolerance leaves headroom for the TPU's default (reduced-precision) f32
    # matmul path in the XLA reference vs. the kernel; typical deviation ~1e-6.
    assert jnp.allclose(out, ref, atol=2e-3, rtol=2e-3), "mismatch vs reference"

    print("KERNEL_OK")
</pallas_src>

<mosaic_0001>
module attributes {stable_mosaic.version = 11 : i64} {
  func.func @_self_attention_kernel(%arg0: i32, %arg1: memref<16x32xf32, #tpu.memory_space<vmem>>, %arg2: memref<32x96xf32, #tpu.memory_space<vmem>>, %arg3: memref<1x96xf32, #tpu.memory_space<vmem>>, %arg4: memref<64x32xf32, #tpu.memory_space<vmem>>, %arg5: memref<64x16xf32, #tpu.memory_space<vmem>>, %arg6: memref<16x32xf32, #tpu.memory_space<vmem>>) attributes {dimension_semantics = [#tpu.dimension_semantics<arbitrary>], iteration_bounds = array<i64: 1>, scalar_prefetch = 0 : i64, scratch_operands = 0 : i64, tpu.core_type = #tpu.core_type<tc>, window_params = [{pipeline_mode = #tpu.pipeline_mode<synchronous>, transform_indices = @transform_0, window_bounds = array<i64: 16, 32>}, {pipeline_mode = #tpu.pipeline_mode<synchronous>, transform_indices = @transform_1, window_bounds = array<i64: 32, 96>}, {pipeline_mode = #tpu.pipeline_mode<synchronous>, transform_indices = @transform_2, window_bounds = array<i64: 1, 96>}, {pipeline_mode = #tpu.pipeline_mode<synchronous>, transform_indices = @transform_3, window_bounds = array<i64: 64, 32>}, {pipeline_mode = #tpu.pipeline_mode<synchronous>, transform_indices = @transform_4, window_bounds = array<i64: 64, 16>}, {pipeline_mode = #tpu.pipeline_mode<synchronous>, transform_indices = @transform_5, window_bounds = array<i64: 16, 32>}]} {
    %c0 = arith.constant 0 : index
    %c0_0 = arith.constant 0 : index
    %0 = vector.load %arg1[%c0, %c0_0] : memref<16x32xf32, #tpu.memory_space<vmem>>, vector<16x32xf32>
    %c0_1 = arith.constant 0 : index
    %c0_2 = arith.constant 0 : index
    %1 = vector.load %arg2[%c0_1, %c0_2] : memref<32x96xf32, #tpu.memory_space<vmem>>, vector<32x96xf32>
    %cst = arith.constant dense<0.000000e+00> : vector<16x96xf32>
    %2 = tpu.matmul %0, %1, %cst {dimension_numbers = #tpu.dot_dimension_numbers<[1], [0], [0], [1], [0, 0, 1, 1], [], []>} : vector<16x32xf32>, vector<32x96xf32>, vector<16x96xf32> -> vector<16x96xf32>
    %c0_3 = arith.constant 0 : index
    %c0_4 = arith.constant 0 : index
    %3 = vector.load %arg3[%c0_3, %c0_4] : memref<1x96xf32, #tpu.memory_space<vmem>>, vector<1x96xf32>
    %4 = vector.broadcast %3 : vector<1x96xf32> to vector<16x96xf32>
    %5 = arith.addf %2, %4 : vector<16x96xf32>
    %6 = vector.extract_strided_slice %5 {offsets = [0, 0], sizes = [16, 32], strides = [1, 1]} : vector<16x96xf32> to vector<16x32xf32>
    %7 = vector.extract_strided_slice %5 {offsets = [0, 32], sizes = [16, 32], strides = [1, 1]} : vector<16x96xf32> to vector<16x32xf32>
    %8 = vector.extract_strided_slice %5 {offsets = [0, 64], sizes = [16, 32], strides = [1, 1]} : vector<16x96xf32> to vector<16x32xf32>
    %c0_5 = arith.constant 0 : index
    %c0_6 = arith.constant 0 : index
    %9 = vector.load %arg4[%c0_5, %c0_6] : memref<64x32xf32, #tpu.memory_space<vmem>>, vector<64x32xf32>
    %10 = tpu.concatenate %6, %6, %6, %6 in 0 : vector<16x32xf32>, vector<16x32xf32>, vector<16x32xf32>, vector<16x32xf32> -> vector<64x32xf32>
    %11 = arith.mulf %10, %9 : vector<64x32xf32>
    %cst_7 = arith.constant dense<0.000000e+00> : vector<64x16xf32>
    %12 = tpu.matmul %11, %7, %cst_7 {dimension_numbers = #tpu.dot_dimension_numbers<[1], [1], [0], [0], [0, 0, 1, 0], [], []>} : vector<64x32xf32>, vector<16x32xf32>, vector<64x16xf32> -> vector<64x16xf32>
    %cst_8 = arith.constant 0.353553385 : f32
    %13 = vector.broadcast %cst_8 : f32 to vector<64x16xf32>
    %14 = arith.mulf %12, %13 : vector<64x16xf32>
    %c0_9 = arith.constant 0 : index
    %c0_10 = arith.constant 0 : index
    %15 = vector.load %arg5[%c0_9, %c0_10] : memref<64x16xf32, #tpu.memory_space<vmem>>, vector<64x16xf32>
    %16 = arith.addf %14, %15 : vector<64x16xf32>
    %cst_11 = arith.constant dense<0xFF800000> : vector<64xf32>
    %17 = vector.multi_reduction <maximumf>, %16, %cst_11 [1] : vector<64x16xf32> to vector<64xf32>
    %18 = vector.shape_cast %17 : vector<64xf32> to vector<64x1xf32>
    %19 = vector.broadcast %18 : vector<64x1xf32> to vector<64x16xf32>
    %20 = arith.subf %16, %19 : vector<64x16xf32>
    %21 = math.exp %20 : vector<64x16xf32>
    %cst_12 = arith.constant dense<0.000000e+00> : vector<64xf32>
    %22 = vector.multi_reduction <add>, %21, %cst_12 [1] : vector<64x16xf32> to vector<64xf32>
    %23 = vector.shape_cast %22 : vector<64xf32> to vector<64x1xf32>
    %cst_13 = arith.constant 1.000000e+00 : f32
    %24 = vector.broadcast %cst_13 : f32 to vector<64x1xf32>
    %25 = arith.divf %24, %23 : vector<64x1xf32>
    %26 = vector.broadcast %25 : vector<64x1xf32> to vector<64x16xf32>
    %27 = arith.mulf %21, %26 : vector<64x16xf32>
    %cst_14 = arith.constant dense<0.000000e+00> : vector<64x32xf32>
    %28 = tpu.matmul %27, %8, %cst_14 {dimension_numbers = #tpu.dot_dimension_numbers<[1], [0], [0], [1], [0, 0, 1, 1], [], []>} : vector<64x16xf32>, vector<16x32xf32>, vector<64x32xf32> -> vector<64x32xf32>
    %29 = arith.mulf %28, %9 : vector<64x32xf32>
    %30 = vector.extract_strided_slice %29 {offsets = [0, 0], sizes = [16, 32], strides = [1, 1]} : vector<64x32xf32> to vector<16x32xf32>
    %31 = vector.extract_strided_slice %29 {offsets = [16, 0], sizes = [16, 32], strides = [1, 1]} : vector<64x32xf32> to vector<16x32xf32>
    %32 = arith.addf %30, %31 : vector<16x32xf32>
    %33 = vector.extract_strided_slice %29 {offsets = [32, 0], sizes = [16, 32], strides = [1, 1]} : vector<64x32xf32> to vector<16x32xf32>
    %34 = arith.addf %32, %33 : vector<16x32xf32>
    %35 = vector.extract_strided_slice %29 {offsets = [48, 0], sizes = [16, 32], strides = [1, 1]} : vector<64x32xf32> to vector<16x32xf32>
    %36 = arith.addf %34, %35 : vector<16x32xf32>
    %c0_15 = arith.constant 0 : index
    %c0_16 = arith.constant 0 : index
    %37 = vector.load %arg6[%c0_15, %c0_16] : memref<16x32xf32, #tpu.memory_space<vmem>>, vector<16x32xf32>
    tpu.vector_store %arg6[%c0_15, %c0_16], %36 {strides = array<i32>} : memref<16x32xf32, #tpu.memory_space<vmem>>, vector<16x32xf32>,
    return
  }
  func.func @transform_0(%arg0: i32) -> (i32, i32) {
    %c0_i32 = arith.constant 0 : i32
    %c0_i32_0 = arith.constant 0 : i32
    %c0_i32_1 = arith.constant 0 : i32
    return %c0_i32, %c0_i32_0 : i32, i32
  }
  func.func @transform_1(%arg0: i32) -> (i32, i32) {
    %c0_i32 = arith.constant 0 : i32
    %c0_i32_0 = arith.constant 0 : i32
    %c0_i32_1 = arith.constant 0 : i32
    return %c0_i32, %c0_i32_0 : i32, i32
  }
  func.func @transform_2(%arg0: i32) -> (i32, i32) {
    %c0_i32 = arith.constant 0 : i32
    %c0_i32_0 = arith.constant 0 : i32
    %c0_i32_1 = arith.constant 0 : i32
    return %c0_i32, %c0_i32_0 : i32, i32
  }
  func.func @transform_3(%arg0: i32) -> (i32, i32) {
    %c0_i32 = arith.constant 0 : i32
    %c0_i32_0 = arith.constant 0 : i32
    %c0_i32_1 = arith.constant 0 : i32
    return %c0_i32, %c0_i32_0 : i32, i32
  }
  func.func @transform_4(%arg0: i32) -> (i32, i32) {
    %c0_i32 = arith.constant 0 : i32
    %c0_i32_0 = arith.constant 0 : i32
    %c0_i32_1 = arith.constant 0 : i32
    return %c0_i32, %c0_i32_0 : i32, i32
  }
  func.func @transform_5(%arg0: i32) -> (i32, i32) {
    %c0_i32 = arith.constant 0 : i32
    %c0_i32_0 = arith.constant 0 : i32
    %c0_i32_1 = arith.constant 0 : i32
    return %c0_i32, %c0_i32_0 : i32, i32
  }
}

</mosaic_0001>

<llo_original>
// kernel: self_attention.1
$region0: #{self_attention.1}
  #allocation0 [shape = 'u32[]', space=smem, size = 0x4, offset = 0x4, fixed_abs, tag = 'smem constant byte address 0x4 - core index']
  #allocation1 [shape = 'u32[72,128]{1,0:T(1,128)}', space=vmem, size = 0x9000, scoped, tag = 'internal scratch']
  %s0 = inlined_call_operand.vmem [shape: f32[16,32], index: 0, kind: input, shape index: {}]
  %s1 = inlined_call_operand.vmem [shape: f32[32,96], index: 1, kind: input, shape index: {}]
  %s2 = inlined_call_operand.vmem [shape: f32[1,96], index: 2, kind: input, shape index: {}]
  %s3 = inlined_call_operand.vmem [shape: f32[64,32], index: 3, kind: input, shape index: {}]
  %s4 = inlined_call_operand.vmem [shape: f32[64,16], index: 4, kind: input, shape index: {}]
  %s5 = inlined_call_operand.hbm [shape: f32[16,32], index: 5, kind: output, shape index: {}]
  %s6 = sld [smem:[#allocation0]]
  $region30: #{self_attention.1} parent=0
    _
  %s8 = ssub.s32 1, %s6
  %s9 = scalar_select 0, %s8, %s6
  $region1: #{self_attention.1} parent=0
    #allocation2 [shape = 'u8[8192]{0}', space=vmem, size = 0x2000, scoped, tag = 'output window, operand 0, single buffered']
    #allocation3 [shape = 's32[1]{0}', space=sflag, size = 0x4, scoped, tag = 'scoped memory for self_attention.1']
    %10 = vsyncpa [#allocation3], 0
    // Predicated region
    $region2: #{self_attention.1} parent=1 // pred_check
      _
    $region3: #{self_attention.1} parent=1 // pred_check_branch
      %12 = sbr.rel (0) target = $region5
    $region4: #{self_attention.1} parent=1 // pred_region
      _
    $region5: #{self_attention.1} parent=1 // pred_fallthru
      _
    // Predicated region
    $region6: #{self_attention.1} parent=1 // pred_check
      _
    $region7: #{self_attention.1} parent=1 // pred_check_branch
      %14 = sbr.rel (0) target = $region9
    $region8: #{self_attention.1} parent=1 // pred_region
      _
    $region9: #{self_attention.1} parent=1 // pred_fallthru
      _
    // Predicated region
    $region10: #{self_attention.1} parent=1 // pred_check
      _
    $region11: #{self_attention.1} parent=1 // pred_check_branch
      %16 = sbr.rel (0) target = $region13
    $region12: #{self_attention.1} parent=1 // pred_region
      _
    $region13: #{self_attention.1} parent=1 // pred_fallthru
      _
    // Predicated region
    $region14: #{self_attention.1} parent=1 // pred_check
      _
    $region15: #{self_attention.1} parent=1 // pred_check_branch
      %18 = sbr.rel (0) target = $region17
    $region16: #{self_attention.1} parent=1 // pred_region
      _
    $region17: #{self_attention.1} parent=1 // pred_fallthru
      _
    // Predicated region
    $region18: #{self_attention.1} parent=1 // pred_check
      _
    $region19: #{self_attention.1} parent=1 // pred_check_branch
      %20 = sbr.rel (0) target = $region21
    $region20: #{self_attention.1} parent=1 // pred_region
      _
    $region21: #{self_attention.1} parent=1 // pred_fallthru
      _
    %v21 = vld [vmem:[%s0] sm:$0xff]
    %v22 = vld [vmem:[%s0 + $0x8] sm:$0xff]
    %v23 = vld [vmem:[%s1] sm:$0xff]
    %v24 = vld [vmem:[%s1 + $0x8] sm:$0xff]
    %v25 = vld [vmem:[%s1 + $0x10] sm:$0xff]
    %v26 = vld [vmem:[%s1 + $0x18] sm:$0xff]
    %v27 = vld [vmem:[%s2] sm:$0x1]
    %v29 = vperm.slane %v27, 0
    %vm31 = vcmask 261120
    %v33 = vsel %vm31, %v21, 0
    %v36 = vsel %vm31, %v22, 0
    %38 = vmatpush.msra.mxu0 0.0
    %39 = vmatpush.msra.mxu0 0.0
    %40 = vmatpush.msra.mxu0 0.0
    %41 = vmatpush.msra.mxu0 0.0
    %42 = vmatpush.msra.mxu0 0.0
    %43 = vmatpush.msra.mxu0 0.0
    %44 = vmatpush.msra.mxu0 0.0
    %45 = vmatpush.msra.mxu0 0.0
    %46 = vmatpush.msra.mxu0 0.0
    %47 = vmatpush.msra.mxu0 0.0
    %48 = vmatpush.msra.mxu0 0.0
    %49 = vmatpush.msra.mxu0 0.0
    %50 = vmatpush.msra.mxu0 %v26
    %51 = vmatpush.msra.mxu0 %v25
    %52 = vmatpush.msra.mxu0 %v24
    %53 = vmatpush.msra.mxu0 %v23
    %54 = vmatmul.f32.gmra.mxu0 %v33
    %v55 = vpop.f32.mrf.mxu0
    %v56 = vadd.f32 %v29, %v55
    %57 = vmatmul.f32.gmra.mxu0 %v36
    %v58 = vpop.f32.mrf.mxu0
    %v59 = vadd.f32 %v29, %v58
    %60 = vdwg.mxu0
    %v61 = vld [vmem:[%s3] sm:$0xff]
    %v62 = vld [vmem:[%s3 + $0x8] sm:$0xff]
    %v63 = vld [vmem:[%s3 + $0x10] sm:$0xff]
    %v64 = vld [vmem:[%s3 + $0x18] sm:$0xff]
    %v65 = vld [vmem:[%s3 + $0x20] sm:$0xff]
    %v66 = vld [vmem:[%s3 + $0x28] sm:$0xff]
    %v67 = vld [vmem:[%s3 + $0x30] sm:$0xff]
    %v68 = vld [vmem:[%s3 + $0x38] sm:$0xff]
    %v69 = vmul.f32 %v56, %v61
    %v70 = vmul.f32 %v59, %v62
    %v71 = vmul.f32 %v56, %v63
    %v72 = vmul.f32 %v59, %v64
    %v73 = vmul.f32 %v56, %v65
    %v74 = vmul.f32 %v59, %v66
    %v75 = vmul.f32 %v56, %v67
    %v76 = vmul.f32 %v59, %v68
    %79 = vrot.lane.b32.xlu0 %v56, 96
    %v80 = vpop.permute.xlu0 %79
    %81 = vrot.lane.b32.xlu0 %v59, 96
    %v82 = vpop.permute.xlu0 %81
    %v84 = vsel %vm31, %v69, 0
    %v87 = vsel %vm31, %v70, 0
    %v90 = vsel %vm31, %v71, 0
    %v93 = vsel %vm31, %v72, 0
    %v96 = vsel %vm31, %v73, 0
    %v99 = vsel %vm31, %v74, 0
    %v102 = vsel %vm31, %v75, 0
    %v105 = vsel %vm31, %v76, 0
    %v107 = vsel %vm31, %v80, 0
    %v109 = vsel %vm31, %v82, 0
    %111 = vmatpush.xpose.msra.mxu0 0.0
    %112 = vmatpush.xpose.msra.mxu0 0.0
    %113 = vmatpush.xpose.msra.mxu0 0.0
    %114 = vmatpush.xpose.msra.mxu0 0.0
    %115 = vmatpush.xpose.msra.mxu0 0.0
    %116 = vmatpush.xpose.msra.mxu0 0.0
    %117 = vmatpush.xpose.msra.mxu0 0.0
    %118 = vmatpush.xpose.msra.mxu0 0.0
    %119 = vmatpush.xpose.msra.mxu0 0.0
    %120 = vmatpush.xpose.msra.mxu0 0.0
    %121 = vmatpush.xpose.msra.mxu0 0.0
    %122 = vmatpush.xpose.msra.mxu0 0.0
    %123 = vmatpush.xpose.msra.mxu0 0.0
    %124 = vmatpush.xpose.msra.mxu0 0.0
    %125 = vmatpush.xpose.msra.mxu0 %v109
    %126 = vmatpush.xpose.msra.mxu0 %v107
    %127 = vmatmul.f32.gmra.mxu0 %v84
    %v128 = vpop.f32.mrf.mxu0
    %v129 = vadd.f32 0.0, %v128
    %130 = vmatmul.f32.gmra.mxu0 %v87
    %v131 = vpop.f32.mrf.mxu0
    %v132 = vadd.f32 0.0, %v131
    %133 = vmatmul.f32.gmra.mxu0 %v90
    %v134 = vpop.f32.mrf.mxu0
    %v135 = vadd.f32 0.0, %v134
    %136 = vmatmul.f32.gmra.mxu0 %v93
    %v137 = vpop.f32.mrf.mxu0
    %v138 = vadd.f32 0.0, %v137
    %139 = vmatmul.f32.gmra.mxu0 %v96
    %v140 = vpop.f32.mrf.mxu0
    %v141 = vadd.f32 0.0, %v140
    %142 = vmatmul.f32.gmra.mxu0 %v99
    %v143 = vpop.f32.mrf.mxu0
    %v144 = vadd.f32 0.0, %v143
    %145 = vmatmul.f32.gmra.mxu0 %v102
    %v146 = vpop.f32.mrf.mxu0
    %v147 = vadd.f32 0.0, %v146
    %148 = vmatmul.f32.gmra.mxu0 %v105
    %v149 = vpop.f32.mrf.mxu0
    %v150 = vadd.f32 0.0, %v149
    %151 = vdwg.mxu0
    %v152 = vmul.f32 %v129, 0.35355338
    %v153 = vmul.f32 %v132, 0.35355338
    %v154 = vmul.f32 %v135, 0.35355338
    %v155 = vmul.f32 %v138, 0.35355338
    %v156 = vmul.f32 %v141, 0.35355338
    %v157 = vmul.f32 %v144, 0.35355338
    %v158 = vmul.f32 %v147, 0.35355338
    %v159 = vmul.f32 %v150, 0.35355338
    %v160 = vld [vmem:[%s4] sm:$0xff]
    %v161 = vld [vmem:[%s4 + $0x8] sm:$0xff]
    %v162 = vld [vmem:[%s4 + $0x10] sm:$0xff]
    %v163 = vld [vmem:[%s4 + $0x18] sm:$0xff]
    %v164 = vld [vmem:[%s4 + $0x20] sm:$0xff]
    %v165 = vld [vmem:[%s4 + $0x28] sm:$0xff]
    %v166 = vld [vmem:[%s4 + $0x30] sm:$0xff]
    %v167 = vld [vmem:[%s4 + $0x38] sm:$0xff]
    %v168 = vadd.f32 %v152, %v160
    %v169 = vadd.f32 %v153, %v161
    %v170 = vadd.f32 %v154, %v162
    %v171 = vadd.f32 %v155, %v163
    %v172 = vadd.f32 %v156, %v164
    %v173 = vadd.f32 %v157, %v165
    %v174 = vadd.f32 %v158, %v166
    %v175 = vadd.f32 %v159, %v167
    %vm176 = vcmask 130048
    %v177 = vsel %vm176, %v168, -inf
    %178 = vmax.xlane.f32.xlu0 %v177
    %v179 = vpop.xlane.xlu0 %178
    %v180 = vsel %vm176, %v169, -inf
    %181 = vmax.xlane.f32.xlu0 %v180
    %v182 = vpop.xlane.xlu0 %181
    %v183 = vsel %vm176, %v170, -inf
    %184 = vmax.xlane.f32.xlu0 %v183
    %v185 = vpop.xlane.xlu0 %184
    %v186 = vsel %vm176, %v171, -inf
    %187 = vmax.xlane.f32.xlu0 %v186
    %v188 = vpop.xlane.xlu0 %187
    %v189 = vsel %vm176, %v172, -inf
    %190 = vmax.xlane.f32.xlu0 %v189
    %v191 = vpop.xlane.xlu0 %190
    %v192 = vsel %vm176, %v173, -inf
    %193 = vmax.xlane.f32.xlu0 %v192
    %v194 = vpop.xlane.xlu0 %193
    %v195 = vsel %vm176, %v174, -inf
    %196 = vmax.xlane.f32.xlu0 %v195
    %v197 = vpop.xlane.xlu0 %196
    %v198 = vsel %vm176, %v175, -inf
    %199 = vmax.xlane.f32.xlu0 %v198
    %v200 = vpop.xlane.xlu0 %199
    %v201 = vsub.f32 %v168, %v179
    %v202 = vsub.f32 %v169, %v182
    %v203 = vsub.f32 %v170, %v185
    %v204 = vsub.f32 %v171, %v188
    %v205 = vsub.f32 %v172, %v191
    %v206 = vsub.f32 %v173, %v194
    %v207 = vsub.f32 %v174, %v197
    %v208 = vsub.f32 %v175, %v200
    %v209 = vmul.f32 %v201, 1.442695
    %v210 = vpow.pop %v209
    %v211 = vmul.f32 %v202, 1.442695
    %v212 = vpow.pop %v211
    %v213 = vmul.f32 %v203, 1.442695
    %v214 = vpow.pop %v213
    %v215 = vmul.f32 %v204, 1.442695
    %v216 = vpow.pop %v215
    %v217 = vmul.f32 %v205, 1.442695
    %v218 = vpow.pop %v217
    %v219 = vmul.f32 %v206, 1.442695
    %v220 = vpow.pop %v219
    %v221 = vmul.f32 %v207, 1.442695
    %v222 = vpow.pop %v221
    %v223 = vmul.f32 %v208, 1.442695
    %v224 = vpow.pop %v223
    %v225 = vsel %vm176, %v210, 0.0
    %226 = vadd.xlane.f32.xlu0 %v225
    %v227 = vpop.xlane.xlu0 %226
    %v228 = vsel %vm176, %v212, 0.0
    %229 = vadd.xlane.f32.xlu0 %v228
    %v230 = vpop.xlane.xlu0 %229
    %v231 = vsel %vm176, %v214, 0.0
    %232 = vadd.xlane.f32.xlu0 %v231
    %v233 = vpop.xlane.xlu0 %232
    %v234 = vsel %vm176, %v216, 0.0
    %235 = vadd.xlane.f32.xlu0 %v234
    %v236 = vpop.xlane.xlu0 %235
    %v237 = vsel %vm176, %v218, 0.0
    %238 = vadd.xlane.f32.xlu0 %v237
    %v239 = vpop.xlane.xlu0 %238
    %v240 = vsel %vm176, %v220, 0.0
    %241 = vadd.xlane.f32.xlu0 %v240
    %v242 = vpop.xlane.xlu0 %241
    %v243 = vsel %vm176, %v222, 0.0
    %244 = vadd.xlane.f32.xlu0 %v243
    %v245 = vpop.xlane.xlu0 %244
    %v246 = vsel %vm176, %v224, 0.0
    %247 = vadd.xlane.f32.xlu0 %v246
    %v248 = vpop.xlane.xlu0 %247
    %v249 = vrcp.pop %v227
    %v250 = vmul.f32 %v227, %v249
    %v251 = vsub.f32 1.0, %v250
    %v252 = vmul.f32 %v249, %v251
    %v253 = vadd.f32 %v249, %v252
    %vm254 = vweird.f32 %v227
    %vm255 = vweird.f32 %v249
    %vm256 = vmor %vm254, %vm255
    %v257 = vsel %vm256, %v249, %v253
    %v258 = vand.u32 2147483647, %v227
    %vm259 = vcmp.eq.f32.partialorder %v258, 8.507059e+37
    %v260 = vand.u32 %v227, 2147483648
    %v261 = vor.u32 1.1754944e-38, %v260
    %v262 = vsel %vm259, %v261, %v257
    %v263 = vmul.f32 1.0, %v262
    %v264 = vrcp.pop %v230
    %v265 = vmul.f32 %v230, %v264
    %v266 = vsub.f32 1.0, %v265
    %v267 = vmul.f32 %v264, %v266
    %v268 = vadd.f32 %v264, %v267
    %vm269 = vweird.f32 %v230
    %vm270 = vweird.f32 %v264
    %vm271 = vmor %vm269, %vm270
    %v272 = vsel %vm271, %v264, %v268
    %v273 = vand.u32 2147483647, %v230
    %vm274 = vcmp.eq.f32.partialorder %v273, 8.507059e+37
    %v275 = vand.u32 %v230, 2147483648
    %v276 = vor.u32 1.1754944e-38, %v275
    %v277 = vsel %vm274, %v276, %v272
    %v278 = vmul.f32 1.0, %v277
    %v279 = vrcp.pop %v233
    %v280 = vmul.f32 %v233, %v279
    %v281 = vsub.f32 1.0, %v280
    %v282 = vmul.f32 %v279, %v281
    %v283 = vadd.f32 %v279, %v282
    %vm284 = vweird.f32 %v233
    %vm285 = vweird.f32 %v279
    %vm286 = vmor %vm284, %vm285
    %v287 = vsel %vm286, %v279, %v283
    %v288 = vand.u32 2147483647, %v233
    %vm289 = vcmp.eq.f32.partialorder %v288, 8.507059e+37
    %v290 = vand.u32 %v233, 2147483648
    %v291 = vor.u32 1.1754944e-38, %v290
    %v292 = vsel %vm289, %v291, %v287
    %v293 = vmul.f32 1.0, %v292
    %v294 = vrcp.pop %v236
    %v295 = vmul.f32 %v236, %v294
    %v296 = vsub.f32 1.0, %v295
    %v297 = vmul.f32 %v294, %v296
    %v298 = vadd.f32 %v294, %v297
    %vm299 = vweird.f32 %v236
    %vm300 = vweird.f32 %v294
    %vm301 = vmor %vm299, %vm300
    %v302 = vsel %vm301, %v294, %v298
    %v303 = vand.u32 2147483647, %v236
    %vm304 = vcmp.eq.f32.partialorder %v303, 8.507059e+37
    %v305 = vand.u32 %v236, 2147483648
    %v306 = vor.u32 1.1754944e-38, %v305
    %v307 = vsel %vm304, %v306, %v302
    %v308 = vmul.f32 1.0, %v307
    %v309 = vrcp.pop %v239
    %v310 = vmul.f32 %v239, %v309
    %v311 = vsub.f32 1.0, %v310
    %v312 = vmul.f32 %v309, %v311
    %v313 = vadd.f32 %v309, %v312
    %vm314 = vweird.f32 %v239
    %vm315 = vweird.f32 %v309
    %vm316 = vmor %vm314, %vm315
    %v317 = vsel %vm316, %v309, %v313
    %v318 = vand.u32 2147483647, %v239
    %vm319 = vcmp.eq.f32.partialorder %v318, 8.507059e+37
    %v320 = vand.u32 %v239, 2147483648
    %v321 = vor.u32 1.1754944e-38, %v320
    %v322 = vsel %vm319, %v321, %v317
    %v323 = vmul.f32 1.0, %v322
    %v324 = vrcp.pop %v242
    %v325 = vmul.f32 %v242, %v324
    %v326 = vsub.f32 1.0, %v325
    %v327 = vmul.f32 %v324, %v326
    %v328 = vadd.f32 %v324, %v327
    %vm329 = vweird.f32 %v242
    %vm330 = vweird.f32 %v324
    %vm331 = vmor %vm329, %vm330
    %v332 = vsel %vm331, %v324, %v328
    %v333 = vand.u32 2147483647, %v242
    %vm334 = vcmp.eq.f32.partialorder %v333, 8.507059e+37
    %v335 = vand.u32 %v242, 2147483648
    %v336 = vor.u32 1.1754944e-38, %v335
    %v337 = vsel %vm334, %v336, %v332
    %v338 = vmul.f32 1.0, %v337
    %v339 = vrcp.pop %v245
    %v340 = vmul.f32 %v245, %v339
    %v341 = vsub.f32 1.0, %v340
    %v342 = vmul.f32 %v339, %v341
    %v343 = vadd.f32 %v339, %v342
    %vm344 = vweird.f32 %v245
    %vm345 = vweird.f32 %v339
    %vm346 = vmor %vm344, %vm345
    %v347 = vsel %vm346, %v339, %v343
    %v348 = vand.u32 2147483647, %v245
    %vm349 = vcmp.eq.f32.partialorder %v348, 8.507059e+37
    %v350 = vand.u32 %v245, 2147483648
    %v351 = vor.u32 1.1754944e-38, %v350
    %v352 = vsel %vm349, %v351, %v347
    %v353 = vmul.f32 1.0, %v352
    %v354 = vrcp.pop %v248
    %v355 = vmul.f32 %v248, %v354
    %v356 = vsub.f32 1.0, %v355
    %v357 = vmul.f32 %v354, %v356
    %v358 = vadd.f32 %v354, %v357
    %vm359 = vweird.f32 %v248
    %vm360 = vweird.f32 %v354
    %vm361 = vmor %vm359, %vm360
    %v362 = vsel %vm361, %v354, %v358
    %v363 = vand.u32 2147483647, %v248
    %vm364 = vcmp.eq.f32.partialorder %v363, 8.507059e+37
    %v365 = vand.u32 %v248, 2147483648
    %v366 = vor.u32 1.1754944e-38, %v365
    %v367 = vsel %vm364, %v366, %v362
    %v368 = vmul.f32 1.0, %v367
    %v369 = vmul.f32 %v210, %v263
    %v370 = vmul.f32 %v212, %v278
    %v371 = vmul.f32 %v214, %v293
    %v372 = vmul.f32 %v216, %v308
    %v373 = vmul.f32 %v218, %v323
    %v374 = vmul.f32 %v220, %v338
    %v375 = vmul.f32 %v222, %v353
    %v376 = vmul.f32 %v224, %v368
    %377 = vrot.lane.b32.xlu0 %v56, 64
    %v378 = vpop.permute.xlu0 %377
    %379 = vrot.lane.b32.xlu0 %v59, 64
    %v380 = vpop.permute.xlu0 %379
    %v384 = vsel %vm176, %v369, 0
    %v387 = vsel %vm176, %v370, 0
    %v390 = vsel %vm176, %v371, 0
    %v393 = vsel %vm176, %v372, 0
    %v396 = vsel %vm176, %v373, 0
    %v399 = vsel %vm176, %v374, 0
    %v402 = vsel %vm176, %v375, 0
    %v405 = vsel %vm176, %v376, 0
    %407 = vmatpush.msra.mxu0 0.0
    %408 = vmatpush.msra.mxu0 0.0
    %409 = vmatpush.msra.mxu0 0.0
    %410 = vmatpush.msra.mxu0 0.0
    %411 = vmatpush.msra.mxu0 0.0
    %412 = vmatpush.msra.mxu0 0.0
    %413 = vmatpush.msra.mxu0 0.0
    %414 = vmatpush.msra.mxu0 0.0
    %415 = vmatpush.msra.mxu0 0.0
    %416 = vmatpush.msra.mxu0 0.0
    %417 = vmatpush.msra.mxu0 0.0
    %418 = vmatpush.msra.mxu0 0.0
    %419 = vmatpush.msra.mxu0 0.0
    %420 = vmatpush.msra.mxu0 0.0
    %421 = vmatpush.msra.mxu0 %v380
    %422 = vmatpush.msra.mxu0 %v378
    %423 = vmatmul.f32.gmra.mxu0 %v384
    %v424 = vpop.f32.mrf.mxu0
    %v425 = vadd.f32 0.0, %v424
    %426 = vmatmul.f32.gmra.mxu0 %v387
    %v427 = vpop.f32.mrf.mxu0
    %v428 = vadd.f32 0.0, %v427
    %429 = vmatmul.f32.gmra.mxu0 %v390
    %v430 = vpop.f32.mrf.mxu0
    %v431 = vadd.f32 0.0, %v430
    %432 = vmatmul.f32.gmra.mxu0 %v393
    %v433 = vpop.f32.mrf.mxu0
    %v434 = vadd.f32 0.0, %v433
    %435 = vmatmul.f32.gmra.mxu0 %v396
    %v436 = vpop.f32.mrf.mxu0
    %v437 = vadd.f32 0.0, %v436
    %438 = vmatmul.f32.gmra.mxu0 %v399
    %v439 = vpop.f32.mrf.mxu0
    %v440 = vadd.f32 0.0, %v439
    %441 = vmatmul.f32.gmra.mxu0 %v402
    %v442 = vpop.f32.mrf.mxu0
    %v443 = vadd.f32 0.0, %v442
    %444 = vmatmul.f32.gmra.mxu0 %v405
    %v445 = vpop.f32.mrf.mxu0
    %v446 = vadd.f32 0.0, %v445
    %447 = vdwg.mxu0
    %v448 = vmul.f32 %v425, %v61
    %v449 = vmul.f32 %v428, %v62
    %v450 = vmul.f32 %v431, %v63
    %v451 = vmul.f32 %v434, %v64
    %v452 = vmul.f32 %v437, %v65
    %v453 = vmul.f32 %v440, %v66
    %v454 = vmul.f32 %v443, %v67
    %v455 = vmul.f32 %v446, %v68
    %v456 = vadd.f32 %v448, %v450
    %v457 = vadd.f32 %v449, %v451
    %v458 = vadd.f32 %v456, %v452
    %v459 = vadd.f32 %v457, %v453
    %v460 = vadd.f32 %v458, %v454
    %v461 = vadd.f32 %v459, %v455
    %462 = vst.msk [vmem:[#allocation2] sm:$0xff] %vm31, %v460
    %463 = vst.msk [vmem:[#allocation2 + $0x8] sm:$0xff] %vm31, %v461
    // Predicated region
    $region22: #{self_attention.1} parent=1 // pred_check
      _
    $region23: #{self_attention.1} parent=1 // pred_check_branch
      %465 = sbr.rel (0) target = $region25
    $region24: #{self_attention.1} parent=1 // pred_region
      %467 = vsyncadd [#allocation3], 0
      %s468 = sshll.u32 [#allocation2], 4
      %s469 = int_to_ptr.vmem [resolvable:$true] %s468
      %s470 = sshll.u32 %s5, 4
      %s471 = int_to_ptr.hbm [resolvable:$true] %s470
      %476 = dma.vmem_to_hbm [thread:$0]  %s469, 256, %s471, [#allocation3], 128, 128, 8
    $region25: #{self_attention.1} parent=1 // pred_fallthru
      _
    // Predicated region
    $region26: #{self_attention.1} parent=1 // pred_check
      _
    $region27: #{self_attention.1} parent=1 // pred_check_branch
      %478 = sbr.rel (0) target = $region29
    $region28: #{self_attention.1} parent=1 // pred_region
      %480 = dma.done [#allocation3], 256
    $region29: #{self_attention.1} parent=1 // pred_fallthru
      _
    %481 = vsyncpa [#allocation3], 1

</llo_original>
